<compile_context>
chip_gen: v5e
topology: v5e:2x2
jax: 0.10.0
libtpu: 0.0.40
codegen_flags: <defaults>
</compile_context>

<pallas_src>
import math

import jax
import jax.numpy as jnp
from jax import lax
from jax.experimental import pallas as pl
from jax.experimental.pallas import tpu as pltpu


# ----------------------------------------------------------------------------
# Parameter setup (glue, not the hot path).
# ----------------------------------------------------------------------------
def init_conv_params(key, dim_in, kh, kw):
    """Deterministic Conv2d-like init: kaiming_uniform(a=sqrt(5)) + uniform bias."""
    kwkey, bkey = jax.random.split(key)
    fan_in = kh * kw                      # in_channels/groups * KH * KW (depthwise)
    bound = 1.0 / math.sqrt(fan_in)
    weight = jax.random.uniform(kwkey, (dim_in, 1, kh, kw), jnp.float32, -bound, bound)
    bias = jax.random.uniform(bkey, (dim_in,), jnp.float32, -bound, bound)
    return weight, bias


def spectral_normalize(weight, key, n_power_iterations=1, eps=1e-12):
    """torch.nn.utils.spectral_norm semantics on a conv weight (dim=0)."""
    c = weight.shape[0]
    w_mat = weight.reshape(c, -1)
    u = jax.random.normal(key, (c,), jnp.float32)
    u = u / (jnp.linalg.norm(u) + eps)
    v = None
    for _ in range(n_power_iterations):
        v = w_mat.T @ u
        v = v / (jnp.linalg.norm(v) + eps)
        u = w_mat @ v
        u = u / (jnp.linalg.norm(u) + eps)
    sigma = u @ (w_mat @ v)
    return weight / sigma


# ----------------------------------------------------------------------------
# Block sizing helpers (VMEM-safe on all generations).
# ----------------------------------------------------------------------------
def _round_up(x, m):
    return -(-x // m) * m


def _padded_vmem_bytes(shape, itemsize=4):
    """Approximate VMEM footprint of a tile after (8,128) layout padding."""
    lead = 1
    for d in shape[:-2]:
        lead *= d
    return lead * _round_up(shape[-2], 8) * _round_up(shape[-1], 128) * itemsize


_VMEM_BLOCK_BUDGET = 20 * 1024 * 1024   # conservative: fits v7x (64 MiB phys / 32 MiB scoped)


def _choose_blocks(N, C, H, W, Hp, Wp, Hout, Wout, KH, KW, itemsize=4):
    # Channel block: keep C whole unless it is lane-aligned and large enough to
    # split (the (8,128) rule requires a partial C block to be a multiple of 128).
    if C % 256 == 0 and C > 256:
        cb = 256
    elif C % 128 == 0 and C > 128:
        cb = 128
    else:
        cb = C

    def step_bytes(nb):
        in_b = _padded_vmem_bytes((nb, H, W, cb), itemsize)
        out_b = _padded_vmem_bytes((nb, Hout, Wout, cb), itemsize)
        pad_b = _padded_vmem_bytes((nb, Hp, Wp, cb), itemsize)
        w_b = _padded_vmem_bytes((KH, KW, cb), itemsize)
        b_b = _padded_vmem_bytes((1, cb), itemsize)
        return 2 * (in_b + out_b + w_b + b_b) + pad_b   # in/out double-buffered

    nb = 1
    for cand in range(N, 0, -1):        # largest divisor of N whose block fits
        if N % cand == 0 and step_bytes(cand) <= _VMEM_BLOCK_BUDGET:
            nb = cand
            break
    # TODO(synk): for single images too large for one block, add H-blocking with
    # a 1-row halo in the index_map; not needed for mel-discriminator shapes.
    return nb, cb, step_bytes(nb)


# ----------------------------------------------------------------------------
# Pallas kernel: depthwise strided conv on a channels-last (Nb, H, W, Cb) tile.
# ----------------------------------------------------------------------------
def _make_dw_conv_kernel(Nb, Cb, H, W, KH, KW, sh, sw, ph, pw, Hp, Wp, Hout, Wout):
    def kernel(x_ref, w_ref, b_ref, o_ref, xpad_ref):
        # ---- In-kernel halo padding: zero the frame, copy the interior.
        #      (No wrapper-side jnp.pad -> no extra HBM round trip of the input.)
        if ph > 0:
            zrow = jnp.zeros((Nb, ph, Wp, Cb), jnp.float32)
            xpad_ref[:, pl.ds(0, ph), :, :] = zrow
            xpad_ref[:, pl.ds(ph + H, ph), :, :] = zrow
        if pw > 0:
            zcol = jnp.zeros((Nb, Hp, pw, Cb), jnp.float32)
            xpad_ref[:, :, pl.ds(0, pw), :] = zcol
            xpad_ref[:, :, pl.ds(pw + W, pw), :] = zcol
        xpad_ref[:, pl.ds(ph, H), pl.ds(pw, W), :] = x_ref[...].astype(jnp.float32)

        # Per-channel filter taps and bias live on the lane axis.
        w = w_ref[...]                                        # (KH, KW, Cb), f32
        taps = [[w[kh, kw].reshape(1, 1, 1, Cb) for kw in range(KW)]
                for kh in range(KH)]
        b = b_ref[...].reshape(1, 1, 1, Cb)                   # per-channel bias

        # ---- Depthwise strided conv, computed directly at output resolution:
        #      per tap, a strided row/col read of the padded tile and a VPU MAC
        #      with the lane-aligned per-channel filter value.  C on lanes means
        #      every vector op is lane-dense for real channel counts.
        #      Bias is folded into the first tap (one fewer full-size VPU add).
        acc = None
        for kh in range(KH):
            h_idx = pl.ds(kh, Hout, sh) if sh > 1 else pl.ds(kh, Hout)
            for kw in range(KW):
                w_idx = pl.ds(kw, Wout, sw) if sw > 1 else pl.ds(kw, Wout)
                patch = xpad_ref[:, h_idx, w_idx, :]          # (Nb, Hout, Wout, Cb)
                contrib = taps[kh][kw] * patch
                acc = (b + contrib) if acc is None else (acc + contrib)
        o_ref[...] = acc.astype(o_ref.dtype)

    return kernel


# ----------------------------------------------------------------------------
# Wrapper: LearnedDownSample.forward (public interface stays NCHW, like torch).
# ----------------------------------------------------------------------------
def learned_downsample(x, weight, bias, layer_type):
    """x: (N, C, H, W).  weight: (C, 1, KH, KW).  bias: (C,)."""
    if layer_type == 'none':
        return x                                     # nn.Identity()
    if layer_type == 'timepreserve':
        (KH, KW), (sh, sw), (ph, pw) = (3, 1), (2, 1), (1, 0)
    elif layer_type == 'half':
        (KH, KW), (sh, sw), (ph, pw) = (3, 3), (2, 2), (1, 1)
    else:
        raise RuntimeError('Got unexpected donwsampletype %s' % layer_type)

    N, C, H, W = x.shape
    Hp, Wp = H + 2 * ph, W + 2 * pw
    Hout = (Hp - KH) // sh + 1
    Wout = (Wp - KW) // sw + 1

    # Channels-last layout plumbing so C rides the 128-lane axis in-kernel.
    # (The NCHW<->NHWC conversions are thin XLA transposes outside the kernel.)
    x_nhwc = jnp.transpose(x, (0, 2, 3, 1))
    w_hwc = jnp.transpose(weight.reshape(C, KH, KW), (1, 2, 0)).astype(jnp.float32)
    b2 = bias.reshape(1, C).astype(jnp.float32)

    Nb, Cb, step_bytes = _choose_blocks(N, C, H, W, Hp, Wp, Hout, Wout, KH, KW)
    grid = (N // Nb, C // Cb)
    vmem_limit = int(min(max(step_bytes + (4 << 20), 16 << 20), 32 << 20))

    kernel = _make_dw_conv_kernel(Nb, Cb, H, W, KH, KW, sh, sw, ph, pw,
                                  Hp, Wp, Hout, Wout)

    out_nhwc = pl.pallas_call(
        kernel,
        out_shape=jax.ShapeDtypeStruct((N, Hout, Wout, C), x.dtype),
        grid_spec=pltpu.PrefetchScalarGridSpec(
            num_scalar_prefetch=0,
            grid=grid,
            in_specs=[
                pl.BlockSpec((Nb, H, W, Cb), lambda n, c: (n, 0, 0, c)),
                pl.BlockSpec((KH, KW, Cb), lambda n, c: (0, 0, c)),
                pl.BlockSpec((1, Cb), lambda n, c: (0, c)),
            ],
            out_specs=pl.BlockSpec((Nb, Hout, Wout, Cb), lambda n, c: (n, 0, 0, c)),
            scratch_shapes=[pltpu.VMEM((Nb, Hp, Wp, Cb), jnp.float32)],
        ),
        compiler_params=pltpu.CompilerParams(
            dimension_semantics=("parallel", "parallel"),
            vmem_limit_bytes=vmem_limit,
        ),
    )(x_nhwc, w_hwc, b2)

    return jnp.transpose(out_nhwc, (0, 3, 1, 2))


# ----------------------------------------------------------------------------
# Reference (plain JAX) for correctness checking.
# ----------------------------------------------------------------------------
def reference_downsample(x, weight, bias, layer_type):
    if layer_type == 'none':
        return x
    if layer_type == 'timepreserve':
        stride, pad = (2, 1), (1, 0)
    else:
        stride, pad = (2, 2), (1, 1)
    C = x.shape[1]
    out = lax.conv_general_dilated(
        x, weight, window_strides=stride,
        padding=[(pad[0], pad[0]), (pad[1], pad[1])],
        dimension_numbers=('NCHW', 'OIHW', 'NCHW'),
        feature_group_count=C)
    return out + bias.reshape(1, C, 1, 1)


if __name__ == "__main__":
    key = jax.random.PRNGKey(0)
    kx, kparam, ku = jax.random.split(key, 3)

    N, C, H, W = 2, 4, 16, 16
    x = jax.random.normal(kx, (N, C, H, W), jnp.float32)

    for layer_type in ("half", "timepreserve", "none"):
        if layer_type == 'none':
            out = learned_downsample(x, None, None, layer_type)
            ref = x
        else:
            KH, KW = (3, 3) if layer_type == 'half' else (3, 1)
            w_raw, b = init_conv_params(kparam, C, KH, KW)
            w_sn = spectral_normalize(w_raw, ku)
            out = learned_downsample(x, w_sn, b, layer_type)
            ref = reference_downsample(x, w_sn, b, layer_type)

        out = jax.block_until_ready(out)
        assert out.shape == ref.shape, (layer_type, out.shape, ref.shape)
        assert jnp.allclose(out, ref, atol=1e-5, rtol=1e-5), layer_type

    print("KERNEL_OK")
</pallas_src>

<mosaic_0001>
module attributes {stable_mosaic.version = 11 : i64} {
  func.func @kernel(%arg0: i32, %arg1: i32, %arg2: memref<2x16x16x4xf32, #tpu.memory_space<vmem>>, %arg3: memref<3x3x4xf32, #tpu.memory_space<vmem>>, %arg4: memref<1x4xf32, #tpu.memory_space<vmem>>, %arg5: memref<2x8x8x4xf32, #tpu.memory_space<vmem>>, %arg6: memref<2x18x18x4xf32, #tpu.memory_space<vmem>>) attributes {dimension_semantics = [#tpu.dimension_semantics<parallel>, #tpu.dimension_semantics<parallel>], iteration_bounds = array<i64: 1, 1>, scalar_prefetch = 0 : i64, scratch_operands = 1 : i64, tpu.core_type = #tpu.core_type<tc>, window_params = [{transform_indices = @transform_0, window_bounds = array<i64: 2, 16, 16, 4>}, {transform_indices = @transform_1, window_bounds = array<i64: 3, 3, 4>}, {transform_indices = @transform_2, window_bounds = array<i64: 1, 4>}, {transform_indices = @transform_3, window_bounds = array<i64: 2, 8, 8, 4>}]} {
    %cst = arith.constant 0.000000e+00 : f32
    %0 = vector.broadcast %cst : f32 to vector<2x1x18x4xf32>
    %c0 = arith.constant 0 : index
    %c0_0 = arith.constant 0 : index
    %c0_1 = arith.constant 0 : index
    %c0_2 = arith.constant 0 : index
    %1 = vector.load %arg6[%c0, %c0_0, %c0_1, %c0_2] : memref<2x18x18x4xf32, #tpu.memory_space<vmem>>, vector<2x1x18x4xf32>
    tpu.vector_store %arg6[%c0, %c0_0, %c0_1, %c0_2], %0 {strides = array<i32>} : memref<2x18x18x4xf32, #tpu.memory_space<vmem>>, vector<2x1x18x4xf32>,
    %c0_3 = arith.constant 0 : index
    %c17 = arith.constant 17 : index
    %c0_4 = arith.constant 0 : index
    %c0_5 = arith.constant 0 : index
    %2 = vector.load %arg6[%c0_3, %c17, %c0_4, %c0_5] : memref<2x18x18x4xf32, #tpu.memory_space<vmem>>, vector<2x1x18x4xf32>
    tpu.vector_store %arg6[%c0_3, %c17, %c0_4, %c0_5], %0 {strides = array<i32>} : memref<2x18x18x4xf32, #tpu.memory_space<vmem>>, vector<2x1x18x4xf32>,
    %cst_6 = arith.constant 0.000000e+00 : f32
    %3 = vector.broadcast %cst_6 : f32 to vector<2x18x1x4xf32>
    %c0_7 = arith.constant 0 : index
    %c0_8 = arith.constant 0 : index
    %c0_9 = arith.constant 0 : index
    %c0_10 = arith.constant 0 : index
    %4 = vector.load %arg6[%c0_7, %c0_8, %c0_9, %c0_10] : memref<2x18x18x4xf32, #tpu.memory_space<vmem>>, vector<2x18x1x4xf32>
    tpu.vector_store %arg6[%c0_7, %c0_8, %c0_9, %c0_10], %3 {strides = array<i32>} : memref<2x18x18x4xf32, #tpu.memory_space<vmem>>, vector<2x18x1x4xf32>,
    %c0_11 = arith.constant 0 : index
    %c0_12 = arith.constant 0 : index
    %c17_13 = arith.constant 17 : index
    %c0_14 = arith.constant 0 : index
    %5 = vector.load %arg6[%c0_11, %c0_12, %c17_13, %c0_14] : memref<2x18x18x4xf32, #tpu.memory_space<vmem>>, vector<2x18x1x4xf32>
    tpu.vector_store %arg6[%c0_11, %c0_12, %c17_13, %c0_14], %3 {strides = array<i32>} : memref<2x18x18x4xf32, #tpu.memory_space<vmem>>, vector<2x18x1x4xf32>,
    %c0_15 = arith.constant 0 : index
    %c0_16 = arith.constant 0 : index
    %c0_17 = arith.constant 0 : index
    %c0_18 = arith.constant 0 : index
    %6 = vector.load %arg2[%c0_15, %c0_16, %c0_17, %c0_18] : memref<2x16x16x4xf32, #tpu.memory_space<vmem>>, vector<2x16x16x4xf32>
    %c0_19 = arith.constant 0 : index
    %c1 = arith.constant 1 : index
    %c1_20 = arith.constant 1 : index
    %c0_21 = arith.constant 0 : index
    %7 = vector.load %arg6[%c0_19, %c1, %c1_20, %c0_21] : memref<2x18x18x4xf32, #tpu.memory_space<vmem>>, vector<2x16x16x4xf32>
    tpu.vector_store %arg6[%c0_19, %c1, %c1_20, %c0_21], %6 {strides = array<i32>} : memref<2x18x18x4xf32, #tpu.memory_space<vmem>>, vector<2x16x16x4xf32>,
    %c0_22 = arith.constant 0 : index
    %c0_23 = arith.constant 0 : index
    %c0_24 = arith.constant 0 : index
    %8 = vector.load %arg3[%c0_22, %c0_23, %c0_24] : memref<3x3x4xf32, #tpu.memory_space<vmem>>, vector<3x3x4xf32>
    %9 = vector.extract_strided_slice %8 {offsets = [0, 0, 0], sizes = [1, 1, 4], strides = [1, 1, 1]} : vector<3x3x4xf32> to vector<1x1x4xf32>
    %10 = vector.shape_cast %9 : vector<1x1x4xf32> to vector<4xf32>
    %11 = vector.shape_cast %10 : vector<4xf32> to vector<1x1x1x4xf32>
    %12 = vector.extract_strided_slice %8 {offsets = [0, 1, 0], sizes = [1, 1, 4], strides = [1, 1, 1]} : vector<3x3x4xf32> to vector<1x1x4xf32>
    %13 = vector.shape_cast %12 : vector<1x1x4xf32> to vector<4xf32>
    %14 = vector.shape_cast %13 : vector<4xf32> to vector<1x1x1x4xf32>
    %15 = vector.extract_strided_slice %8 {offsets = [0, 2, 0], sizes = [1, 1, 4], strides = [1, 1, 1]} : vector<3x3x4xf32> to vector<1x1x4xf32>
    %16 = vector.shape_cast %15 : vector<1x1x4xf32> to vector<4xf32>
    %17 = vector.shape_cast %16 : vector<4xf32> to vector<1x1x1x4xf32>
    %18 = vector.extract_strided_slice %8 {offsets = [1, 0, 0], sizes = [1, 1, 4], strides = [1, 1, 1]} : vector<3x3x4xf32> to vector<1x1x4xf32>
    %19 = vector.shape_cast %18 : vector<1x1x4xf32> to vector<4xf32>
    %20 = vector.shape_cast %19 : vector<4xf32> to vector<1x1x1x4xf32>
    %21 = vector.extract_strided_slice %8 {offsets = [1, 1, 0], sizes = [1, 1, 4], strides = [1, 1, 1]} : vector<3x3x4xf32> to vector<1x1x4xf32>
    %22 = vector.shape_cast %21 : vector<1x1x4xf32> to vector<4xf32>
    %23 = vector.shape_cast %22 : vector<4xf32> to vector<1x1x1x4xf32>
    %24 = vector.extract_strided_slice %8 {offsets = [1, 2, 0], sizes = [1, 1, 4], strides = [1, 1, 1]} : vector<3x3x4xf32> to vector<1x1x4xf32>
    %25 = vector.shape_cast %24 : vector<1x1x4xf32> to vector<4xf32>
    %26 = vector.shape_cast %25 : vector<4xf32> to vector<1x1x1x4xf32>
    %27 = vector.extract_strided_slice %8 {offsets = [2, 0, 0], sizes = [1, 1, 4], strides = [1, 1, 1]} : vector<3x3x4xf32> to vector<1x1x4xf32>
    %28 = vector.shape_cast %27 : vector<1x1x4xf32> to vector<4xf32>
    %29 = vector.shape_cast %28 : vector<4xf32> to vector<1x1x1x4xf32>
    %30 = vector.extract_strided_slice %8 {offsets = [2, 1, 0], sizes = [1, 1, 4], strides = [1, 1, 1]} : vector<3x3x4xf32> to vector<1x1x4xf32>
    %31 = vector.shape_cast %30 : vector<1x1x4xf32> to vector<4xf32>
    %32 = vector.shape_cast %31 : vector<4xf32> to vector<1x1x1x4xf32>
    %33 = vector.extract_strided_slice %8 {offsets = [2, 2, 0], sizes = [1, 1, 4], strides = [1, 1, 1]} : vector<3x3x4xf32> to vector<1x1x4xf32>
    %34 = vector.shape_cast %33 : vector<1x1x4xf32> to vector<4xf32>
    %35 = vector.shape_cast %34 : vector<4xf32> to vector<1x1x1x4xf32>
    %c0_25 = arith.constant 0 : index
    %c0_26 = arith.constant 0 : index
    %36 = vector.load %arg4[%c0_25, %c0_26] : memref<1x4xf32, #tpu.memory_space<vmem>>, vector<1x4xf32>
    %37 = vector.shape_cast %36 : vector<1x4xf32> to vector<1x1x1x4xf32>
    %c0_27 = arith.constant 0 : index
    %c0_28 = arith.constant 0 : index
    %c0_29 = arith.constant 0 : index
    %c0_30 = arith.constant 0 : index
    %38 = tpu.strided_load %arg6[%c0_27, %c0_28, %c0_29, %c0_30] {strides = array<i32: 1, 2, 2, 1>} : memref<2x18x18x4xf32, #tpu.memory_space<vmem>>, vector<2x8x8x4xf32>
    %39 = vector.broadcast %11 : vector<1x1x1x4xf32> to vector<2x8x8x4xf32>
    %40 = arith.mulf %39, %38 : vector<2x8x8x4xf32>
    %41 = vector.broadcast %37 : vector<1x1x1x4xf32> to vector<2x8x8x4xf32>
    %42 = arith.addf %41, %40 : vector<2x8x8x4xf32>
    %c0_31 = arith.constant 0 : index
    %c0_32 = arith.constant 0 : index
    %c1_33 = arith.constant 1 : index
    %c0_34 = arith.constant 0 : index
    %43 = tpu.strided_load %arg6[%c0_31, %c0_32, %c1_33, %c0_34] {strides = array<i32: 1, 2, 2, 1>} : memref<2x18x18x4xf32, #tpu.memory_space<vmem>>, vector<2x8x8x4xf32>
    %44 = vector.broadcast %14 : vector<1x1x1x4xf32> to vector<2x8x8x4xf32>
    %45 = arith.mulf %44, %43 : vector<2x8x8x4xf32>
    %46 = arith.addf %42, %45 : vector<2x8x8x4xf32>
    %c0_35 = arith.constant 0 : index
    %c0_36 = arith.constant 0 : index
    %c2 = arith.constant 2 : index
    %c0_37 = arith.constant 0 : index
    %47 = tpu.strided_load %arg6[%c0_35, %c0_36, %c2, %c0_37] {strides = array<i32: 1, 2, 2, 1>} : memref<2x18x18x4xf32, #tpu.memory_space<vmem>>, vector<2x8x8x4xf32>
    %48 = vector.broadcast %17 : vector<1x1x1x4xf32> to vector<2x8x8x4xf32>
    %49 = arith.mulf %48, %47 : vector<2x8x8x4xf32>
    %50 = arith.addf %46, %49 : vector<2x8x8x4xf32>
    %c0_38 = arith.constant 0 : index
    %c1_39 = arith.constant 1 : index
    %c0_40 = arith.constant 0 : index
    %c0_41 = arith.constant 0 : index
    %51 = tpu.strided_load %arg6[%c0_38, %c1_39, %c0_40, %c0_41] {strides = array<i32: 1, 2, 2, 1>} : memref<2x18x18x4xf32, #tpu.memory_space<vmem>>, vector<2x8x8x4xf32>
    %52 = vector.broadcast %20 : vector<1x1x1x4xf32> to vector<2x8x8x4xf32>
    %53 = arith.mulf %52, %51 : vector<2x8x8x4xf32>
    %54 = arith.addf %50, %53 : vector<2x8x8x4xf32>
    %c0_42 = arith.constant 0 : index
    %c1_43 = arith.constant 1 : index
    %c1_44 = arith.constant 1 : index
    %c0_45 = arith.constant 0 : index
    %55 = tpu.strided_load %arg6[%c0_42, %c1_43, %c1_44, %c0_45] {strides = array<i32: 1, 2, 2, 1>} : memref<2x18x18x4xf32, #tpu.memory_space<vmem>>, vector<2x8x8x4xf32>
    %56 = vector.broadcast %23 : vector<1x1x1x4xf32> to vector<2x8x8x4xf32>
    %57 = arith.mulf %56, %55 : vector<2x8x8x4xf32>
    %58 = arith.addf %54, %57 : vector<2x8x8x4xf32>
    %c0_46 = arith.constant 0 : index
    %c1_47 = arith.constant 1 : index
    %c2_48 = arith.constant 2 : index
    %c0_49 = arith.constant 0 : index
    %59 = tpu.strided_load %arg6[%c0_46, %c1_47, %c2_48, %c0_49] {strides = array<i32: 1, 2, 2, 1>} : memref<2x18x18x4xf32, #tpu.memory_space<vmem>>, vector<2x8x8x4xf32>
    %60 = vector.broadcast %26 : vector<1x1x1x4xf32> to vector<2x8x8x4xf32>
    %61 = arith.mulf %60, %59 : vector<2x8x8x4xf32>
    %62 = arith.addf %58, %61 : vector<2x8x8x4xf32>
    %c0_50 = arith.constant 0 : index
    %c2_51 = arith.constant 2 : index
    %c0_52 = arith.constant 0 : index
    %c0_53 = arith.constant 0 : index
    %63 = tpu.strided_load %arg6[%c0_50, %c2_51, %c0_52, %c0_53] {strides = array<i32: 1, 2, 2, 1>} : memref<2x18x18x4xf32, #tpu.memory_space<vmem>>, vector<2x8x8x4xf32>
    %64 = vector.broadcast %29 : vector<1x1x1x4xf32> to vector<2x8x8x4xf32>
    %65 = arith.mulf %64, %63 : vector<2x8x8x4xf32>
    %66 = arith.addf %62, %65 : vector<2x8x8x4xf32>
    %c0_54 = arith.constant 0 : index
    %c2_55 = arith.constant 2 : index
    %c1_56 = arith.constant 1 : index
    %c0_57 = arith.constant 0 : index
    %67 = tpu.strided_load %arg6[%c0_54, %c2_55, %c1_56, %c0_57] {strides = array<i32: 1, 2, 2, 1>} : memref<2x18x18x4xf32, #tpu.memory_space<vmem>>, vector<2x8x8x4xf32>
    %68 = vector.broadcast %32 : vector<1x1x1x4xf32> to vector<2x8x8x4xf32>
    %69 = arith.mulf %68, %67 : vector<2x8x8x4xf32>
    %70 = arith.addf %66, %69 : vector<2x8x8x4xf32>
    %c0_58 = arith.constant 0 : index
    %c2_59 = arith.constant 2 : index
    %c2_60 = arith.constant 2 : index
    %c0_61 = arith.constant 0 : index
    %71 = tpu.strided_load %arg6[%c0_58, %c2_59, %c2_60, %c0_61] {strides = array<i32: 1, 2, 2, 1>} : memref<2x18x18x4xf32, #tpu.memory_space<vmem>>, vector<2x8x8x4xf32>
    %72 = vector.broadcast %35 : vector<1x1x1x4xf32> to vector<2x8x8x4xf32>
    %73 = arith.mulf %72, %71 : vector<2x8x8x4xf32>
    %74 = arith.addf %70, %73 : vector<2x8x8x4xf32>
    %c0_62 = arith.constant 0 : index
    %c0_63 = arith.constant 0 : index
    %c0_64 = arith.constant 0 : index
    %c0_65 = arith.constant 0 : index
    %75 = vector.load %arg5[%c0_62, %c0_63, %c0_64, %c0_65] : memref<2x8x8x4xf32, #tpu.memory_space<vmem>>, vector<2x8x8x4xf32>
    tpu.vector_store %arg5[%c0_62, %c0_63, %c0_64, %c0_65], %74 {strides = array<i32>} : memref<2x8x8x4xf32, #tpu.memory_space<vmem>>, vector<2x8x8x4xf32>,
    return
  }
  func.func @transform_0(%arg0: i32, %arg1: i32) -> (i32, i32, i32, i32) {
    %c0_i32 = arith.constant 0 : i32
    %c0_i32_0 = arith.constant 0 : i32
    %c0_i32_1 = arith.constant 0 : i32
    return %arg0, %c0_i32, %c0_i32_0, %arg1 : i32, i32, i32, i32
  }
  func.func @transform_1(%arg0: i32, %arg1: i32) -> (i32, i32, i32) {
    %c0_i32 = arith.constant 0 : i32
    %c0_i32_0 = arith.constant 0 : i32
    %c0_i32_1 = arith.constant 0 : i32
    return %c0_i32, %c0_i32_0, %arg1 : i32, i32, i32
  }
  func.func @transform_2(%arg0: i32, %arg1: i32) -> (i32, i32) {
    %c0_i32 = arith.constant 0 : i32
    %c0_i32_0 = arith.constant 0 : i32
    return %c0_i32, %arg1 : i32, i32
  }
  func.func @transform_3(%arg0: i32, %arg1: i32) -> (i32, i32, i32, i32) {
    %c0_i32 = arith.constant 0 : i32
    %c0_i32_0 = arith.constant 0 : i32
    %c0_i32_1 = arith.constant 0 : i32
    return %arg0, %c0_i32, %c0_i32_0, %arg1 : i32, i32, i32, i32
  }
}

</mosaic_0001>

<llo_original>
// kernel: tpu_custom_call.1
$region0: #{tpu_custom_call.1}
  #allocation0 [shape = 'u32[]', space=smem, size = 0x4, offset = 0x4, fixed_abs, tag = 'smem constant byte address 0x4 - core index']
  #allocation1 [shape = 'u32[72,128]{1,0:T(1,128)}', space=vmem, size = 0x9000, scoped, tag = 'internal scratch']
  #allocation2 [shape = 'f32[2,18,18,4]{3,2,1,0:T(8,128)}', space=vmem, size = 0x6c000, scoped, tag = 'scratch operand']
  %s0 = inlined_call_operand.vmem [shape: f32[2,16,16,4], index: 0, kind: input, shape index: {}]
  %s1 = inlined_call_operand.vmem [shape: f32[3,3,4], index: 1, kind: input, shape index: {}]
  %s2 = inlined_call_operand.vmem [shape: f32[1,4], index: 2, kind: input, shape index: {}]
  %s3 = inlined_call_operand.vmem [shape: f32[2,8,8,4], index: 3, kind: output, shape index: {}]
  %s4 = sld [smem:[#allocation0]]
  $region22: #{tpu_custom_call.1} parent=0
    _
  %s6 = ssub.s32 1, %s4
  %s7 = scalar_select 0, %s6, %s4
  // Predicated region
  $region2: #{tpu_custom_call.1} parent=0 // pred_check
    _
  $region3: #{tpu_custom_call.1} parent=0 // pred_check_branch
    %9 = sbr.rel (0) target = $region5
  $region4: #{tpu_custom_call.1} parent=0 // pred_region
    _
  $region5: #{tpu_custom_call.1} parent=0 // pred_fallthru
    _
  // Predicated region
  $region6: #{tpu_custom_call.1} parent=0 // pred_check
    _
  $region7: #{tpu_custom_call.1} parent=0 // pred_check_branch
    %11 = sbr.rel (0) target = $region9
  $region8: #{tpu_custom_call.1} parent=0 // pred_region
    _
  $region9: #{tpu_custom_call.1} parent=0 // pred_fallthru
    _
  // Predicated region
  $region10: #{tpu_custom_call.1} parent=0 // pred_check
    _
  $region11: #{tpu_custom_call.1} parent=0 // pred_check_branch
    %13 = sbr.rel (0) target = $region13
  $region12: #{tpu_custom_call.1} parent=0 // pred_region
    _
  $region13: #{tpu_custom_call.1} parent=0 // pred_fallthru
    _
  %vm14 = vcmask 31744
  %15 = vst.msk [vmem:[#allocation2] sm:$0xff] %vm14, 0.0
  %16 = vst.msk [vmem:[#allocation2 + $0x8] sm:$0xff] %vm14, 0.0
  %vm17 = vcmask 25600
  %18 = vst.msk [vmem:[#allocation2 + $0x10] sm:$0x3] %vm17, 0.0
  %19 = vst.msk [vmem:[#allocation2 + $0x1b0] sm:$0xff] %vm14, 0.0
  %20 = vst.msk [vmem:[#allocation2 + $0x1b8] sm:$0xff] %vm14, 0.0
  %21 = vst.msk [vmem:[#allocation2 + $0x1c0] sm:$0x3] %vm17, 0.0
  %s22 = scalar_lea.vmem [#allocation2], 408
  %23 = vst.msk [vmem:[%s22] sm:$0xff] %vm14, 0.0
  %24 = vst.msk [vmem:[%s22 + $0x8] sm:$0xff] %vm14, 0.0
  %25 = vst.msk [vmem:[%s22 + $0x10] sm:$0x3] %vm17, 0.0
  %26 = vst.msk [vmem:[%s22 + $0x1b0] sm:$0xff] %vm14, 0.0
  %27 = vst.msk [vmem:[%s22 + $0x1b8] sm:$0xff] %vm14, 0.0
  %28 = vst.msk [vmem:[%s22 + $0x1c0] sm:$0x3] %vm17, 0.0
  %vm29 = vcmask 24576
  %30 = vst.msk [vmem:[#allocation2] sm:$0x1] %vm29, 0.0
  %31 = vst.msk [vmem:[#allocation2 + $0x18] sm:$0x1] %vm29, 0.0
  %32 = vst.msk [vmem:[#allocation2 + $0x30] sm:$0x1] %vm29, 0.0
  %33 = vst.msk [vmem:[#allocation2 + $0x48] sm:$0x1] %vm29, 0.0
  %34 = vst.msk [vmem:[#allocation2 + $0x60] sm:$0x1] %vm29, 0.0
  %35 = vst.msk [vmem:[#allocation2 + $0x78] sm:$0x1] %vm29, 0.0
  %36 = vst.msk [vmem:[#allocation2 + $0x90] sm:$0x1] %vm29, 0.0
  %37 = vst.msk [vmem:[#allocation2 + $0xa8] sm:$0x1] %vm29, 0.0
  %38 = vst.msk [vmem:[#allocation2 + $0xc0] sm:$0x1] %vm29, 0.0
  %39 = vst.msk [vmem:[#allocation2 + $0xd8] sm:$0x1] %vm29, 0.0
  %40 = vst.msk [vmem:[#allocation2 + $0xf0] sm:$0x1] %vm29, 0.0
  %41 = vst.msk [vmem:[#allocation2 + $0x108] sm:$0x1] %vm29, 0.0
  %42 = vst.msk [vmem:[#allocation2 + $0x120] sm:$0x1] %vm29, 0.0
  %43 = vst.msk [vmem:[#allocation2 + $0x138] sm:$0x1] %vm29, 0.0
  %44 = vst.msk [vmem:[#allocation2 + $0x150] sm:$0x1] %vm29, 0.0
  %45 = vst.msk [vmem:[#allocation2 + $0x168] sm:$0x1] %vm29, 0.0
  %46 = vst.msk [vmem:[#allocation2 + $0x180] sm:$0x1] %vm29, 0.0
  %47 = vst.msk [vmem:[#allocation2 + $0x198] sm:$0x1] %vm29, 0.0
  %48 = vst.msk [vmem:[#allocation2 + $0x1b0] sm:$0x1] %vm29, 0.0
  %49 = vst.msk [vmem:[#allocation2 + $0x1c8] sm:$0x1] %vm29, 0.0
  %50 = vst.msk [vmem:[#allocation2 + $0x1e0] sm:$0x1] %vm29, 0.0
  %51 = vst.msk [vmem:[#allocation2 + $0x1f8] sm:$0x1] %vm29, 0.0
  %52 = vst.msk [vmem:[#allocation2 + $0x210] sm:$0x1] %vm29, 0.0
  %53 = vst.msk [vmem:[#allocation2 + $0x228] sm:$0x1] %vm29, 0.0
  %54 = vst.msk [vmem:[#allocation2 + $0x240] sm:$0x1] %vm29, 0.0
  %55 = vst.msk [vmem:[#allocation2 + $0x258] sm:$0x1] %vm29, 0.0
  %56 = vst.msk [vmem:[#allocation2 + $0x270] sm:$0x1] %vm29, 0.0
  %57 = vst.msk [vmem:[#allocation2 + $0x288] sm:$0x1] %vm29, 0.0
  %58 = vst.msk [vmem:[#allocation2 + $0x2a0] sm:$0x1] %vm29, 0.0
  %59 = vst.msk [vmem:[#allocation2 + $0x2b8] sm:$0x1] %vm29, 0.0
  %60 = vst.msk [vmem:[#allocation2 + $0x2d0] sm:$0x1] %vm29, 0.0
  %61 = vst.msk [vmem:[#allocation2 + $0x2e8] sm:$0x1] %vm29, 0.0
  %62 = vst.msk [vmem:[#allocation2 + $0x300] sm:$0x1] %vm29, 0.0
  %63 = vst.msk [vmem:[#allocation2 + $0x318] sm:$0x1] %vm29, 0.0
  %64 = vst.msk [vmem:[#allocation2 + $0x330] sm:$0x1] %vm29, 0.0
  %65 = vst.msk [vmem:[#allocation2 + $0x348] sm:$0x1] %vm29, 0.0
  %66 = vst.msk [vmem:[#allocation2 + $0x11] sm:$0x1] %vm29, 0.0
  %67 = vst.msk [vmem:[#allocation2 + $0x29] sm:$0x1] %vm29, 0.0
  %68 = vst.msk [vmem:[#allocation2 + $0x41] sm:$0x1] %vm29, 0.0
  %69 = vst.msk [vmem:[#allocation2 + $0x59] sm:$0x1] %vm29, 0.0
  %70 = vst.msk [vmem:[#allocation2 + $0x71] sm:$0x1] %vm29, 0.0
  %71 = vst.msk [vmem:[#allocation2 + $0x89] sm:$0x1] %vm29, 0.0
  %72 = vst.msk [vmem:[#allocation2 + $0xa1] sm:$0x1] %vm29, 0.0
  %73 = vst.msk [vmem:[#allocation2 + $0xb9] sm:$0x1] %vm29, 0.0
  %74 = vst.msk [vmem:[#allocation2 + $0xd1] sm:$0x1] %vm29, 0.0
  %75 = vst.msk [vmem:[#allocation2 + $0xe9] sm:$0x1] %vm29, 0.0
  %76 = vst.msk [vmem:[#allocation2 + $0x101] sm:$0x1] %vm29, 0.0
  %77 = vst.msk [vmem:[#allocation2 + $0x119] sm:$0x1] %vm29, 0.0
  %78 = vst.msk [vmem:[#allocation2 + $0x131] sm:$0x1] %vm29, 0.0
  %79 = vst.msk [vmem:[#allocation2 + $0x149] sm:$0x1] %vm29, 0.0
  %80 = vst.msk [vmem:[#allocation2 + $0x161] sm:$0x1] %vm29, 0.0
  %81 = vst.msk [vmem:[#allocation2 + $0x179] sm:$0x1] %vm29, 0.0
  %82 = vst.msk [vmem:[#allocation2 + $0x191] sm:$0x1] %vm29, 0.0
  %83 = vst.msk [vmem:[#allocation2 + $0x1a9] sm:$0x1] %vm29, 0.0
  %84 = vst.msk [vmem:[#allocation2 + $0x1c1] sm:$0x1] %vm29, 0.0
  %85 = vst.msk [vmem:[#allocation2 + $0x1d9] sm:$0x1] %vm29, 0.0
  %86 = vst.msk [vmem:[#allocation2 + $0x1f1] sm:$0x1] %vm29, 0.0
  %87 = vst.msk [vmem:[#allocation2 + $0x209] sm:$0x1] %vm29, 0.0
  %88 = vst.msk [vmem:[#allocation2 + $0x221] sm:$0x1] %vm29, 0.0
  %89 = vst.msk [vmem:[#allocation2 + $0x239] sm:$0x1] %vm29, 0.0
  %90 = vst.msk [vmem:[#allocation2 + $0x251] sm:$0x1] %vm29, 0.0
  %91 = vst.msk [vmem:[#allocation2 + $0x269] sm:$0x1] %vm29, 0.0
  %92 = vst.msk [vmem:[#allocation2 + $0x281] sm:$0x1] %vm29, 0.0
  %93 = vst.msk [vmem:[#allocation2 + $0x299] sm:$0x1] %vm29, 0.0
  %94 = vst.msk [vmem:[#allocation2 + $0x2b1] sm:$0x1] %vm29, 0.0
  %95 = vst.msk [vmem:[#allocation2 + $0x2c9] sm:$0x1] %vm29, 0.0
  %96 = vst.msk [vmem:[#allocation2 + $0x2e1] sm:$0x1] %vm29, 0.0
  %97 = vst.msk [vmem:[#allocation2 + $0x2f9] sm:$0x1] %vm29, 0.0
  %98 = vst.msk [vmem:[#allocation2 + $0x311] sm:$0x1] %vm29, 0.0
  %99 = vst.msk [vmem:[#allocation2 + $0x329] sm:$0x1] %vm29, 0.0
  %100 = vst.msk [vmem:[#allocation2 + $0x341] sm:$0x1] %vm29, 0.0
  %101 = vst.msk [vmem:[#allocation2 + $0x359] sm:$0x1] %vm29, 0.0
  %v102 = vld [vmem:[%s0] sm:$0xff]
  %v103 = vld [vmem:[%s0 + $0x8] sm:$0xff]
  %v104 = vld [vmem:[%s0 + $0x10] sm:$0xff]
  %v105 = vld [vmem:[%s0 + $0x18] sm:$0xff]
  %v106 = vld [vmem:[%s0 + $0x20] sm:$0xff]
  %v107 = vld [vmem:[%s0 + $0x28] sm:$0xff]
  %v108 = vld [vmem:[%s0 + $0x30] sm:$0xff]
  %v109 = vld [vmem:[%s0 + $0x38] sm:$0xff]
  %v110 = vld [vmem:[%s0 + $0x40] sm:$0xff]
  %v111 = vld [vmem:[%s0 + $0x48] sm:$0xff]
  %v112 = vld [vmem:[%s0 + $0x50] sm:$0xff]
  %v113 = vld [vmem:[%s0 + $0x58] sm:$0xff]
  %v114 = vld [vmem:[%s0 + $0x60] sm:$0xff]
  %v115 = vld [vmem:[%s0 + $0x68] sm:$0xff]
  %v116 = vld [vmem:[%s0 + $0x70] sm:$0xff]
  %v117 = vld [vmem:[%s0 + $0x78] sm:$0xff]
  %v118 = vld [vmem:[%s0 + $0x80] sm:$0xff]
  %v119 = vld [vmem:[%s0 + $0x88] sm:$0xff]
  %v120 = vld [vmem:[%s0 + $0x90] sm:$0xff]
  %v121 = vld [vmem:[%s0 + $0x98] sm:$0xff]
  %v122 = vld [vmem:[%s0 + $0xa0] sm:$0xff]
  %v123 = vld [vmem:[%s0 + $0xa8] sm:$0xff]
  %v124 = vld [vmem:[%s0 + $0xb0] sm:$0xff]
  %v125 = vld [vmem:[%s0 + $0xb8] sm:$0xff]
  %v126 = vld [vmem:[%s0 + $0xc0] sm:$0xff]
  %v127 = vld [vmem:[%s0 + $0xc8] sm:$0xff]
  %v128 = vld [vmem:[%s0 + $0xd0] sm:$0xff]
  %v129 = vld [vmem:[%s0 + $0xd8] sm:$0xff]
  %v130 = vld [vmem:[%s0 + $0xe0] sm:$0xff]
  %v131 = vld [vmem:[%s0 + $0xe8] sm:$0xff]
  %v132 = vld [vmem:[%s0 + $0xf0] sm:$0xff]
  %v133 = vld [vmem:[%s0 + $0xf8] sm:$0xff]
  %v134 = vld [vmem:[%s0 + $0x100] sm:$0xff]
  %v135 = vld [vmem:[%s0 + $0x108] sm:$0xff]
  %v136 = vld [vmem:[%s0 + $0x110] sm:$0xff]
  %v137 = vld [vmem:[%s0 + $0x118] sm:$0xff]
  %v138 = vld [vmem:[%s0 + $0x120] sm:$0xff]
  %v139 = vld [vmem:[%s0 + $0x128] sm:$0xff]
  %v140 = vld [vmem:[%s0 + $0x130] sm:$0xff]
  %v141 = vld [vmem:[%s0 + $0x138] sm:$0xff]
  %v142 = vld [vmem:[%s0 + $0x140] sm:$0xff]
  %v143 = vld [vmem:[%s0 + $0x148] sm:$0xff]
  %v144 = vld [vmem:[%s0 + $0x150] sm:$0xff]
  %v145 = vld [vmem:[%s0 + $0x158] sm:$0xff]
  %v146 = vld [vmem:[%s0 + $0x160] sm:$0xff]
  %v147 = vld [vmem:[%s0 + $0x168] sm:$0xff]
  %v148 = vld [vmem:[%s0 + $0x170] sm:$0xff]
  %v149 = vld [vmem:[%s0 + $0x178] sm:$0xff]
  %v150 = vld [vmem:[%s0 + $0x180] sm:$0xff]
  %v151 = vld [vmem:[%s0 + $0x188] sm:$0xff]
  %v152 = vld [vmem:[%s0 + $0x190] sm:$0xff]
  %v153 = vld [vmem:[%s0 + $0x198] sm:$0xff]
  %v154 = vld [vmem:[%s0 + $0x1a0] sm:$0xff]
  %v155 = vld [vmem:[%s0 + $0x1a8] sm:$0xff]
  %v156 = vld [vmem:[%s0 + $0x1b0] sm:$0xff]
  %v157 = vld [vmem:[%s0 + $0x1b8] sm:$0xff]
  %v158 = vld [vmem:[%s0 + $0x1c0] sm:$0xff]
  %v159 = vld [vmem:[%s0 + $0x1c8] sm:$0xff]
  %v160 = vld [vmem:[%s0 + $0x1d0] sm:$0xff]
  %v161 = vld [vmem:[%s0 + $0x1d8] sm:$0xff]
  %v162 = vld [vmem:[%s0 + $0x1e0] sm:$0xff]
  %v163 = vld [vmem:[%s0 + $0x1e8] sm:$0xff]
  %v164 = vld [vmem:[%s0 + $0x1f0] sm:$0xff]
  %v165 = vld [vmem:[%s0 + $0x1f8] sm:$0xff]
  %s166 = scalar_lea.vmem [#allocation2], 24
  %167 = vst.msk [vmem:[%s166 + $0x1] sm:$0xff] %vm14, %v102
  %168 = vst.msk [vmem:[%s166 + $0x9] sm:$0xff] %vm14, %v103
  %169 = vst.msk [vmem:[%s166 + $0x19] sm:$0xff] %vm14, %v104
  %170 = vst.msk [vmem:[%s166 + $0x21] sm:$0xff] %vm14, %v105
  %171 = vst.msk [vmem:[%s166 + $0x31] sm:$0xff] %vm14, %v106
  %172 = vst.msk [vmem:[%s166 + $0x39] sm:$0xff] %vm14, %v107
  %173 = vst.msk [vmem:[%s166 + $0x49] sm:$0xff] %vm14, %v108
  %174 = vst.msk [vmem:[%s166 + $0x51] sm:$0xff] %vm14, %v109
  %175 = vst.msk [vmem:[%s166 + $0x61] sm:$0xff] %vm14, %v110
  %176 = vst.msk [vmem:[%s166 + $0x69] sm:$0xff] %vm14, %v111
  %177 = vst.msk [vmem:[%s166 + $0x79] sm:$0xff] %vm14, %v112
  %178 = vst.msk [vmem:[%s166 + $0x81] sm:$0xff] %vm14, %v113
  %179 = vst.msk [vmem:[%s166 + $0x91] sm:$0xff] %vm14, %v114
  %180 = vst.msk [vmem:[%s166 + $0x99] sm:$0xff] %vm14, %v115
  %181 = vst.msk [vmem:[%s166 + $0xa9] sm:$0xff] %vm14, %v116
  %182 = vst.msk [vmem:[%s166 + $0xb1] sm:$0xff] %vm14, %v117
  %183 = vst.msk [vmem:[%s166 + $0xc1] sm:$0xff] %vm14, %v118
  %184 = vst.msk [vmem:[%s166 + $0xc9] sm:$0xff] %vm14, %v119
  %185 = vst.msk [vmem:[%s166 + $0xd9] sm:$0xff] %vm14, %v120
  %186 = vst.msk [vmem:[%s166 + $0xe1] sm:$0xff] %vm14, %v121
  %187 = vst.msk [vmem:[%s166 + $0xf1] sm:$0xff] %vm14, %v122
  %188 = vst.msk [vmem:[%s166 + $0xf9] sm:$0xff] %vm14, %v123
  %189 = vst.msk [vmem:[%s166 + $0x109] sm:$0xff] %vm14, %v124
  %190 = vst.msk [vmem:[%s166 + $0x111] sm:$0xff] %vm14, %v125
  %191 = vst.msk [vmem:[%s166 + $0x121] sm:$0xff] %vm14, %v126
  %192 = vst.msk [vmem:[%s166 + $0x129] sm:$0xff] %vm14, %v127
  %193 = vst.msk [vmem:[%s166 + $0x139] sm:$0xff] %vm14, %v128
  %194 = vst.msk [vmem:[%s166 + $0x141] sm:$0xff] %vm14, %v129
  %195 = vst.msk [vmem:[%s166 + $0x151] sm:$0xff] %vm14, %v130
  %196 = vst.msk [vmem:[%s166 + $0x159] sm:$0xff] %vm14, %v131
  %197 = vst.msk [vmem:[%s166 + $0x169] sm:$0xff] %vm14, %v132
  %198 = vst.msk [vmem:[%s166 + $0x171] sm:$0xff] %vm14, %v133
  %199 = vst.msk [vmem:[%s166 + $0x1b1] sm:$0xff] %vm14, %v134
  %200 = vst.msk [vmem:[%s166 + $0x1b9] sm:$0xff] %vm14, %v135
  %201 = vst.msk [vmem:[%s166 + $0x1c9] sm:$0xff] %vm14, %v136
  %202 = vst.msk [vmem:[%s166 + $0x1d1] sm:$0xff] %vm14, %v137
  %203 = vst.msk [vmem:[%s166 + $0x1e1] sm:$0xff] %vm14, %v138
  %204 = vst.msk [vmem:[%s166 + $0x1e9] sm:$0xff] %vm14, %v139
  %205 = vst.msk [vmem:[%s166 + $0x1f9] sm:$0xff] %vm14, %v140
  %206 = vst.msk [vmem:[%s166 + $0x201] sm:$0xff] %vm14, %v141
  %207 = vst.msk [vmem:[%s166 + $0x211] sm:$0xff] %vm14, %v142
  %208 = vst.msk [vmem:[%s166 + $0x219] sm:$0xff] %vm14, %v143
  %209 = vst.msk [vmem:[%s166 + $0x229] sm:$0xff] %vm14, %v144
  %210 = vst.msk [vmem:[%s166 + $0x231] sm:$0xff] %vm14, %v145
  %211 = vst.msk [vmem:[%s166 + $0x241] sm:$0xff] %vm14, %v146
  %212 = vst.msk [vmem:[%s166 + $0x249] sm:$0xff] %vm14, %v147
  %213 = vst.msk [vmem:[%s166 + $0x259] sm:$0xff] %vm14, %v148
  %214 = vst.msk [vmem:[%s166 + $0x261] sm:$0xff] %vm14, %v149
  %215 = vst.msk [vmem:[%s166 + $0x271] sm:$0xff] %vm14, %v150
  %216 = vst.msk [vmem:[%s166 + $0x279] sm:$0xff] %vm14, %v151
  %217 = vst.msk [vmem:[%s166 + $0x289] sm:$0xff] %vm14, %v152
  %218 = vst.msk [vmem:[%s166 + $0x291] sm:$0xff] %vm14, %v153
  %219 = vst.msk [vmem:[%s166 + $0x2a1] sm:$0xff] %vm14, %v154
  %220 = vst.msk [vmem:[%s166 + $0x2a9] sm:$0xff] %vm14, %v155
  %221 = vst.msk [vmem:[%s166 + $0x2b9] sm:$0xff] %vm14, %v156
  %222 = vst.msk [vmem:[%s166 + $0x2c1] sm:$0xff] %vm14, %v157
  %223 = vst.msk [vmem:[%s166 + $0x2d1] sm:$0xff] %vm14, %v158
  %224 = vst.msk [vmem:[%s166 + $0x2d9] sm:$0xff] %vm14, %v159
  %225 = vst.msk [vmem:[%s166 + $0x2e9] sm:$0xff] %vm14, %v160
  %226 = vst.msk [vmem:[%s166 + $0x2f1] sm:$0xff] %vm14, %v161
  %227 = vst.msk [vmem:[%s166 + $0x301] sm:$0xff] %vm14, %v162
  %228 = vst.msk [vmem:[%s166 + $0x309] sm:$0xff] %vm14, %v163
  %229 = vst.msk [vmem:[%s166 + $0x319] sm:$0xff] %vm14, %v164
  %230 = vst.msk [vmem:[%s166 + $0x321] sm:$0xff] %vm14, %v165
  %v231 = vld [vmem:[%s1] sm:$0x7]
  %v232 = vld [vmem:[%s1 + $0x4] sm:$0x7]
  %v233 = vld [vmem:[%s1 + $0x8] sm:$0x7]
  %v234 = vld [vmem:[%s2] sm:$0x1]
  %v235 = vld [vmem:[#allocation2] ss:$2 sm:$0xff]
  %s236 = scalar_lea.vmem [#allocation2], 48
  %v237 = vld [vmem:[%s236] ss:$2 sm:$0xff]
  %s238 = scalar_lea.vmem [#allocation2], 96
  %v239 = vld [vmem:[%s238] ss:$2 sm:$0xff]
  %s240 = scalar_lea.vmem [#allocation2], 144
  %v241 = vld [vmem:[%s240] ss:$2 sm:$0xff]
  %s242 = scalar_lea.vmem [#allocation2], 192
  %v243 = vld [vmem:[%s242] ss:$2 sm:$0xff]
  %s244 = scalar_lea.vmem [#allocation2], 240
  %v245 = vld [vmem:[%s244] ss:$2 sm:$0xff]
  %s246 = scalar_lea.vmem [#allocation2], 288
  %v247 = vld [vmem:[%s246] ss:$2 sm:$0xff]
  %s248 = scalar_lea.vmem [#allocation2], 336
  %v249 = vld [vmem:[%s248] ss:$2 sm:$0xff]
  %s250 = scalar_lea.vmem [#allocation2], 432
  %v251 = vld [vmem:[%s250] ss:$2 sm:$0xff]
  %s252 = scalar_lea.vmem [#allocation2], 480
  %v253 = vld [vmem:[%s252] ss:$2 sm:$0xff]
  %s254 = scalar_lea.vmem [#allocation2], 528
  %v255 = vld [vmem:[%s254] ss:$2 sm:$0xff]
  %s256 = scalar_lea.vmem [#allocation2], 576
  %v257 = vld [vmem:[%s256] ss:$2 sm:$0xff]
  %s258 = scalar_lea.vmem [#allocation2], 624
  %v259 = vld [vmem:[%s258] ss:$2 sm:$0xff]
  %s260 = scalar_lea.vmem [#allocation2], 672
  %v261 = vld [vmem:[%s260] ss:$2 sm:$0xff]
  %s262 = scalar_lea.vmem [#allocation2], 720
  %v263 = vld [vmem:[%s262] ss:$2 sm:$0xff]
  %s264 = scalar_lea.vmem [#allocation2], 768
  %v265 = vld [vmem:[%s264] ss:$2 sm:$0xff]
  %v266 = vperm.slane %v231, 0
  %v267 = vmul.f32 %v266, %v235
  %v268 = vmul.f32 %v266, %v237
  %v269 = vmul.f32 %v266, %v239
  %v270 = vmul.f32 %v266, %v241
  %v271 = vmul.f32 %v266, %v243
  %v272 = vmul.f32 %v266, %v245
  %v273 = vmul.f32 %v266, %v247
  %v274 = vmul.f32 %v266, %v249
  %v275 = vmul.f32 %v266, %v251
  %v276 = vmul.f32 %v266, %v253
  %v277 = vmul.f32 %v266, %v255
  %v278 = vmul.f32 %v266, %v257
  %v279 = vmul.f32 %v266, %v259
  %v280 = vmul.f32 %v266, %v261
  %v281 = vmul.f32 %v266, %v263
  %v282 = vmul.f32 %v266, %v265
  %v284 = vperm.slane %v234, 0
  %v286 = vadd.f32 %v284, %v267
  %v287 = vadd.f32 %v284, %v268
  %v288 = vadd.f32 %v284, %v269
  %v289 = vadd.f32 %v284, %v270
  %v290 = vadd.f32 %v284, %v271
  %v291 = vadd.f32 %v284, %v272
  %v292 = vadd.f32 %v284, %v273
  %v293 = vadd.f32 %v284, %v274
  %v294 = vadd.f32 %v284, %v275
  %v295 = vadd.f32 %v284, %v276
  %v296 = vadd.f32 %v284, %v277
  %v297 = vadd.f32 %v284, %v278
  %v298 = vadd.f32 %v284, %v279
  %v299 = vadd.f32 %v284, %v280
  %v300 = vadd.f32 %v284, %v281
  %v301 = vadd.f32 %v284, %v282
  %s302 = scalar_lea.vmem [#allocation2], 1
  %v303 = vld [vmem:[%s302] ss:$2 sm:$0xff]
  %s304 = scalar_lea.vmem [#allocation2], 49
  %v305 = vld [vmem:[%s304] ss:$2 sm:$0xff]
  %s306 = scalar_lea.vmem [#allocation2], 97
  %v307 = vld [vmem:[%s306] ss:$2 sm:$0xff]
  %s308 = scalar_lea.vmem [#allocation2], 145
  %v309 = vld [vmem:[%s308] ss:$2 sm:$0xff]
  %s310 = scalar_lea.vmem [#allocation2], 193
  %v311 = vld [vmem:[%s310] ss:$2 sm:$0xff]
  %s312 = scalar_lea.vmem [#allocation2], 241
  %v313 = vld [vmem:[%s312] ss:$2 sm:$0xff]
  %s314 = scalar_lea.vmem [#allocation2], 289
  %v315 = vld [vmem:[%s314] ss:$2 sm:$0xff]
  %s316 = scalar_lea.vmem [#allocation2], 337
  %v317 = vld [vmem:[%s316] ss:$2 sm:$0xff]
  %s318 = scalar_lea.vmem [#allocation2], 433
  %v319 = vld [vmem:[%s318] ss:$2 sm:$0xff]
  %s320 = scalar_lea.vmem [#allocation2], 481
  %v321 = vld [vmem:[%s320] ss:$2 sm:$0xff]
  %s322 = scalar_lea.vmem [#allocation2], 529
  %v323 = vld [vmem:[%s322] ss:$2 sm:$0xff]
  %s324 = scalar_lea.vmem [#allocation2], 577
  %v325 = vld [vmem:[%s324] ss:$2 sm:$0xff]
  %s326 = scalar_lea.vmem [#allocation2], 625
  %v327 = vld [vmem:[%s326] ss:$2 sm:$0xff]
  %s328 = scalar_lea.vmem [#allocation2], 673
  %v329 = vld [vmem:[%s328] ss:$2 sm:$0xff]
  %s330 = scalar_lea.vmem [#allocation2], 721
  %v331 = vld [vmem:[%s330] ss:$2 sm:$0xff]
  %s332 = scalar_lea.vmem [#allocation2], 769
  %v333 = vld [vmem:[%s332] ss:$2 sm:$0xff]
  %v334 = vperm.slane %v231, 1
  %v335 = vmul.f32 %v334, %v303
  %v336 = vmul.f32 %v334, %v305
  %v337 = vmul.f32 %v334, %v307
  %v338 = vmul.f32 %v334, %v309
  %v339 = vmul.f32 %v334, %v311
  %v340 = vmul.f32 %v334, %v313
  %v341 = vmul.f32 %v334, %v315
  %v342 = vmul.f32 %v334, %v317
  %v343 = vmul.f32 %v334, %v319
  %v344 = vmul.f32 %v334, %v321
  %v345 = vmul.f32 %v334, %v323
  %v346 = vmul.f32 %v334, %v325
  %v347 = vmul.f32 %v334, %v327
  %v348 = vmul.f32 %v334, %v329
  %v349 = vmul.f32 %v334, %v331
  %v350 = vmul.f32 %v334, %v333
  %v351 = vadd.f32 %v286, %v335
  %v352 = vadd.f32 %v287, %v336
  %v353 = vadd.f32 %v288, %v337
  %v354 = vadd.f32 %v289, %v338
  %v355 = vadd.f32 %v290, %v339
  %v356 = vadd.f32 %v291, %v340
  %v357 = vadd.f32 %v292, %v341
  %v358 = vadd.f32 %v293, %v342
  %v359 = vadd.f32 %v294, %v343
  %v360 = vadd.f32 %v295, %v344
  %v361 = vadd.f32 %v296, %v345
  %v362 = vadd.f32 %v297, %v346
  %v363 = vadd.f32 %v298, %v347
  %v364 = vadd.f32 %v299, %v348
  %v365 = vadd.f32 %v300, %v349
  %v366 = vadd.f32 %v301, %v350
  %s367 = scalar_lea.vmem [#allocation2], 2
  %v368 = vld [vmem:[%s367] ss:$2 sm:$0xff]
  %s369 = scalar_lea.vmem [#allocation2], 50
  %v370 = vld [vmem:[%s369] ss:$2 sm:$0xff]
  %s371 = scalar_lea.vmem [#allocation2], 98
  %v372 = vld [vmem:[%s371] ss:$2 sm:$0xff]
  %s373 = scalar_lea.vmem [#allocation2], 146
  %v374 = vld [vmem:[%s373] ss:$2 sm:$0xff]
  %s375 = scalar_lea.vmem [#allocation2], 194
  %v376 = vld [vmem:[%s375] ss:$2 sm:$0xff]
  %s377 = scalar_lea.vmem [#allocation2], 242
  %v378 = vld [vmem:[%s377] ss:$2 sm:$0xff]
  %s379 = scalar_lea.vmem [#allocation2], 290
  %v380 = vld [vmem:[%s379] ss:$2 sm:$0xff]
  %s381 = scalar_lea.vmem [#allocation2], 338
  %v382 = vld [vmem:[%s381] ss:$2 sm:$0xff]
  %s383 = scalar_lea.vmem [#allocation2], 434
  %v384 = vld [vmem:[%s383] ss:$2 sm:$0xff]
  %s385 = scalar_lea.vmem [#allocation2], 482
  %v386 = vld [vmem:[%s385] ss:$2 sm:$0xff]
  %s387 = scalar_lea.vmem [#allocation2], 530
  %v388 = vld [vmem:[%s387] ss:$2 sm:$0xff]
  %s389 = scalar_lea.vmem [#allocation2], 578
  %v390 = vld [vmem:[%s389] ss:$2 sm:$0xff]
  %s391 = scalar_lea.vmem [#allocation2], 626
  %v392 = vld [vmem:[%s391] ss:$2 sm:$0xff]
  %s393 = scalar_lea.vmem [#allocation2], 674
  %v394 = vld [vmem:[%s393] ss:$2 sm:$0xff]
  %s395 = scalar_lea.vmem [#allocation2], 722
  %v396 = vld [vmem:[%s395] ss:$2 sm:$0xff]
  %s397 = scalar_lea.vmem [#allocation2], 770
  %v398 = vld [vmem:[%s397] ss:$2 sm:$0xff]
  %v399 = vperm.slane %v231, 2
  %v400 = vmul.f32 %v399, %v368
  %v401 = vmul.f32 %v399, %v370
  %v402 = vmul.f32 %v399, %v372
  %v403 = vmul.f32 %v399, %v374
  %v404 = vmul.f32 %v399, %v376
  %v405 = vmul.f32 %v399, %v378
  %v406 = vmul.f32 %v399, %v380
  %v407 = vmul.f32 %v399, %v382
  %v408 = vmul.f32 %v399, %v384
  %v409 = vmul.f32 %v399, %v386
  %v410 = vmul.f32 %v399, %v388
  %v411 = vmul.f32 %v399, %v390
  %v412 = vmul.f32 %v399, %v392
  %v413 = vmul.f32 %v399, %v394
  %v414 = vmul.f32 %v399, %v396
  %v415 = vmul.f32 %v399, %v398
  %v416 = vadd.f32 %v351, %v400
  %v417 = vadd.f32 %v352, %v401
  %v418 = vadd.f32 %v353, %v402
  %v419 = vadd.f32 %v354, %v403
  %v420 = vadd.f32 %v355, %v404
  %v421 = vadd.f32 %v356, %v405
  %v422 = vadd.f32 %v357, %v406
  %v423 = vadd.f32 %v358, %v407
  %v424 = vadd.f32 %v359, %v408
  %v425 = vadd.f32 %v360, %v409
  %v426 = vadd.f32 %v361, %v410
  %v427 = vadd.f32 %v362, %v411
  %v428 = vadd.f32 %v363, %v412
  %v429 = vadd.f32 %v364, %v413
  %v430 = vadd.f32 %v365, %v414
  %v431 = vadd.f32 %v366, %v415
  %v432 = vld [vmem:[%s166] ss:$2 sm:$0xff]
  %s433 = scalar_lea.vmem %s166, 48 [#allocation2]
  %v434 = vld [vmem:[%s433] ss:$2 sm:$0xff]
  %s435 = scalar_lea.vmem %s166, 96 [#allocation2]
  %v436 = vld [vmem:[%s435] ss:$2 sm:$0xff]
  %s437 = scalar_lea.vmem %s166, 144 [#allocation2]
  %v438 = vld [vmem:[%s437] ss:$2 sm:$0xff]
  %s439 = scalar_lea.vmem %s166, 192 [#allocation2]
  %v440 = vld [vmem:[%s439] ss:$2 sm:$0xff]
  %s441 = scalar_lea.vmem %s166, 240 [#allocation2]
  %v442 = vld [vmem:[%s441] ss:$2 sm:$0xff]
  %s443 = scalar_lea.vmem %s166, 288 [#allocation2]
  %v444 = vld [vmem:[%s443] ss:$2 sm:$0xff]
  %s445 = scalar_lea.vmem %s166, 336 [#allocation2]
  %v446 = vld [vmem:[%s445] ss:$2 sm:$0xff]
  %s447 = scalar_lea.vmem %s166, 432 [#allocation2]
  %v448 = vld [vmem:[%s447] ss:$2 sm:$0xff]
  %s449 = scalar_lea.vmem %s166, 480 [#allocation2]
  %v450 = vld [vmem:[%s449] ss:$2 sm:$0xff]
  %s451 = scalar_lea.vmem %s166, 528 [#allocation2]
  %v452 = vld [vmem:[%s451] ss:$2 sm:$0xff]
  %s453 = scalar_lea.vmem %s166, 576 [#allocation2]
  %v454 = vld [vmem:[%s453] ss:$2 sm:$0xff]
  %s455 = scalar_lea.vmem %s166, 624 [#allocation2]
  %v456 = vld [vmem:[%s455] ss:$2 sm:$0xff]
  %s457 = scalar_lea.vmem %s166, 672 [#allocation2]
  %v458 = vld [vmem:[%s457] ss:$2 sm:$0xff]
  %s459 = scalar_lea.vmem %s166, 720 [#allocation2]
  %v460 = vld [vmem:[%s459] ss:$2 sm:$0xff]
  %s461 = scalar_lea.vmem %s166, 768 [#allocation2]
  %v462 = vld [vmem:[%s461] ss:$2 sm:$0xff]
  %v463 = vperm.slane %v232, 0
  %v464 = vmul.f32 %v463, %v432
  %v465 = vmul.f32 %v463, %v434
  %v466 = vmul.f32 %v463, %v436
  %v467 = vmul.f32 %v463, %v438
  %v468 = vmul.f32 %v463, %v440
  %v469 = vmul.f32 %v463, %v442
  %v470 = vmul.f32 %v463, %v444
  %v471 = vmul.f32 %v463, %v446
  %v472 = vmul.f32 %v463, %v448
  %v473 = vmul.f32 %v463, %v450
  %v474 = vmul.f32 %v463, %v452
  %v475 = vmul.f32 %v463, %v454
  %v476 = vmul.f32 %v463, %v456
  %v477 = vmul.f32 %v463, %v458
  %v478 = vmul.f32 %v463, %v460
  %v479 = vmul.f32 %v463, %v462
  %v480 = vadd.f32 %v416, %v464
  %v481 = vadd.f32 %v417, %v465
  %v482 = vadd.f32 %v418, %v466
  %v483 = vadd.f32 %v419, %v467
  %v484 = vadd.f32 %v420, %v468
  %v485 = vadd.f32 %v421, %v469
  %v486 = vadd.f32 %v422, %v470
  %v487 = vadd.f32 %v423, %v471
  %v488 = vadd.f32 %v424, %v472
  %v489 = vadd.f32 %v425, %v473
  %v490 = vadd.f32 %v426, %v474
  %v491 = vadd.f32 %v427, %v475
  %v492 = vadd.f32 %v428, %v476
  %v493 = vadd.f32 %v429, %v477
  %v494 = vadd.f32 %v430, %v478
  %v495 = vadd.f32 %v431, %v479
  %s496 = scalar_lea.vmem %s166, 1 [#allocation2]
  %v497 = vld [vmem:[%s496] ss:$2 sm:$0xff]
  %s498 = scalar_lea.vmem %s166, 49 [#allocation2]
  %v499 = vld [vmem:[%s498] ss:$2 sm:$0xff]
  %s500 = scalar_lea.vmem %s166, 97 [#allocation2]
  %v501 = vld [vmem:[%s500] ss:$2 sm:$0xff]
  %s502 = scalar_lea.vmem %s166, 145 [#allocation2]
  %v503 = vld [vmem:[%s502] ss:$2 sm:$0xff]
  %s504 = scalar_lea.vmem %s166, 193 [#allocation2]
  %v505 = vld [vmem:[%s504] ss:$2 sm:$0xff]
  %s506 = scalar_lea.vmem %s166, 241 [#allocation2]
  %v507 = vld [vmem:[%s506] ss:$2 sm:$0xff]
  %s508 = scalar_lea.vmem %s166, 289 [#allocation2]
  %v509 = vld [vmem:[%s508] ss:$2 sm:$0xff]
  %s510 = scalar_lea.vmem %s166, 337 [#allocation2]
  %v511 = vld [vmem:[%s510] ss:$2 sm:$0xff]
  %s512 = scalar_lea.vmem %s166, 433 [#allocation2]
  %v513 = vld [vmem:[%s512] ss:$2 sm:$0xff]
  %s514 = scalar_lea.vmem %s166, 481 [#allocation2]
  %v515 = vld [vmem:[%s514] ss:$2 sm:$0xff]
  %s516 = scalar_lea.vmem %s166, 529 [#allocation2]
  %v517 = vld [vmem:[%s516] ss:$2 sm:$0xff]
  %s518 = scalar_lea.vmem %s166, 577 [#allocation2]
  %v519 = vld [vmem:[%s518] ss:$2 sm:$0xff]
  %s520 = scalar_lea.vmem %s166, 625 [#allocation2]
  %v521 = vld [vmem:[%s520] ss:$2 sm:$0xff]
  %s522 = scalar_lea.vmem %s166, 673 [#allocation2]
  %v523 = vld [vmem:[%s522] ss:$2 sm:$0xff]
  %s524 = scalar_lea.vmem %s166, 721 [#allocation2]
  %v525 = vld [vmem:[%s524] ss:$2 sm:$0xff]
  %s526 = scalar_lea.vmem %s166, 769 [#allocation2]
  %v527 = vld [vmem:[%s526] ss:$2 sm:$0xff]
  %v528 = vperm.slane %v232, 1
  %v529 = vmul.f32 %v528, %v497
  %v530 = vmul.f32 %v528, %v499
  %v531 = vmul.f32 %v528, %v501
  %v532 = vmul.f32 %v528, %v503
  %v533 = vmul.f32 %v528, %v505
  %v534 = vmul.f32 %v528, %v507
  %v535 = vmul.f32 %v528, %v509
  %v536 = vmul.f32 %v528, %v511
  %v537 = vmul.f32 %v528, %v513
  %v538 = vmul.f32 %v528, %v515
  %v539 = vmul.f32 %v528, %v517
  %v540 = vmul.f32 %v528, %v519
  %v541 = vmul.f32 %v528, %v521
  %v542 = vmul.f32 %v528, %v523
  %v543 = vmul.f32 %v528, %v525
  %v544 = vmul.f32 %v528, %v527
  %v545 = vadd.f32 %v480, %v529
  %v546 = vadd.f32 %v481, %v530
  %v547 = vadd.f32 %v482, %v531
  %v548 = vadd.f32 %v483, %v532
  %v549 = vadd.f32 %v484, %v533
  %v550 = vadd.f32 %v485, %v534
  %v551 = vadd.f32 %v486, %v535
  %v552 = vadd.f32 %v487, %v536
  %v553 = vadd.f32 %v488, %v537
  %v554 = vadd.f32 %v489, %v538
  %v555 = vadd.f32 %v490, %v539
  %v556 = vadd.f32 %v491, %v540
  %v557 = vadd.f32 %v492, %v541
  %v558 = vadd.f32 %v493, %v542
  %v559 = vadd.f32 %v494, %v543
  %v560 = vadd.f32 %v495, %v544
  %s561 = scalar_lea.vmem %s166, 2 [#allocation2]
  %v562 = vld [vmem:[%s561] ss:$2 sm:$0xff]
  %s563 = scalar_lea.vmem %s166, 50 [#allocation2]
  %v564 = vld [vmem:[%s563] ss:$2 sm:$0xff]
  %s565 = scalar_lea.vmem %s166, 98 [#allocation2]
  %v566 = vld [vmem:[%s565] ss:$2 sm:$0xff]
  %s567 = scalar_lea.vmem %s166, 146 [#allocation2]
  %v568 = vld [vmem:[%s567] ss:$2 sm:$0xff]
  %s569 = scalar_lea.vmem %s166, 194 [#allocation2]
  %v570 = vld [vmem:[%s569] ss:$2 sm:$0xff]
  %s571 = scalar_lea.vmem %s166, 242 [#allocation2]
  %v572 = vld [vmem:[%s571] ss:$2 sm:$0xff]
  %s573 = scalar_lea.vmem %s166, 290 [#allocation2]
  %v574 = vld [vmem:[%s573] ss:$2 sm:$0xff]
  %s575 = scalar_lea.vmem %s166, 338 [#allocation2]
  %v576 = vld [vmem:[%s575] ss:$2 sm:$0xff]
  %s577 = scalar_lea.vmem %s166, 434 [#allocation2]
  %v578 = vld [vmem:[%s577] ss:$2 sm:$0xff]
  %s579 = scalar_lea.vmem %s166, 482 [#allocation2]
  %v580 = vld [vmem:[%s579] ss:$2 sm:$0xff]
  %s581 = scalar_lea.vmem %s166, 530 [#allocation2]
  %v582 = vld [vmem:[%s581] ss:$2 sm:$0xff]
  %s583 = scalar_lea.vmem %s166, 578 [#allocation2]
  %v584 = vld [vmem:[%s583] ss:$2 sm:$0xff]
  %s585 = scalar_lea.vmem %s166, 626 [#allocation2]
  %v586 = vld [vmem:[%s585] ss:$2 sm:$0xff]
  %s587 = scalar_lea.vmem %s166, 674 [#allocation2]
  %v588 = vld [vmem:[%s587] ss:$2 sm:$0xff]
  %s589 = scalar_lea.vmem %s166, 722 [#allocation2]
  %v590 = vld [vmem:[%s589] ss:$2 sm:$0xff]
  %s591 = scalar_lea.vmem %s166, 770 [#allocation2]
  %v592 = vld [vmem:[%s591] ss:$2 sm:$0xff]
  %v593 = vperm.slane %v232, 2
  %v594 = vmul.f32 %v593, %v562
  %v595 = vmul.f32 %v593, %v564
  %v596 = vmul.f32 %v593, %v566
  %v597 = vmul.f32 %v593, %v568
  %v598 = vmul.f32 %v593, %v570
  %v599 = vmul.f32 %v593, %v572
  %v600 = vmul.f32 %v593, %v574
  %v601 = vmul.f32 %v593, %v576
  %v602 = vmul.f32 %v593, %v578
  %v603 = vmul.f32 %v593, %v580
  %v604 = vmul.f32 %v593, %v582
  %v605 = vmul.f32 %v593, %v584
  %v606 = vmul.f32 %v593, %v586
  %v607 = vmul.f32 %v593, %v588
  %v608 = vmul.f32 %v593, %v590
  %v609 = vmul.f32 %v593, %v592
  %v610 = vadd.f32 %v545, %v594
  %v611 = vadd.f32 %v546, %v595
  %v612 = vadd.f32 %v547, %v596
  %v613 = vadd.f32 %v548, %v597
  %v614 = vadd.f32 %v549, %v598
  %v615 = vadd.f32 %v550, %v599
  %v616 = vadd.f32 %v551, %v600
  %v617 = vadd.f32 %v552, %v601
  %v618 = vadd.f32 %v553, %v602
  %v619 = vadd.f32 %v554, %v603
  %v620 = vadd.f32 %v555, %v604
  %v621 = vadd.f32 %v556, %v605
  %v622 = vadd.f32 %v557, %v606
  %v623 = vadd.f32 %v558, %v607
  %v624 = vadd.f32 %v559, %v608
  %v625 = vadd.f32 %v560, %v609
  %s626 = scalar_lea.vmem [#allocation2], 48
  %v627 = vld [vmem:[%s626] ss:$2 sm:$0xff]
  %s628 = scalar_lea.vmem %s626, 48 [#allocation2]
  %v629 = vld [vmem:[%s628] ss:$2 sm:$0xff]
  %s630 = scalar_lea.vmem %s626, 96 [#allocation2]
  %v631 = vld [vmem:[%s630] ss:$2 sm:$0xff]
  %s632 = scalar_lea.vmem %s626, 144 [#allocation2]
  %v633 = vld [vmem:[%s632] ss:$2 sm:$0xff]
  %s634 = scalar_lea.vmem %s626, 192 [#allocation2]
  %v635 = vld [vmem:[%s634] ss:$2 sm:$0xff]
  %s636 = scalar_lea.vmem %s626, 240 [#allocation2]
  %v637 = vld [vmem:[%s636] ss:$2 sm:$0xff]
  %s638 = scalar_lea.vmem %s626, 288 [#allocation2]
  %v639 = vld [vmem:[%s638] ss:$2 sm:$0xff]
  %s640 = scalar_lea.vmem %s626, 336 [#allocation2]
  %v641 = vld [vmem:[%s640] ss:$2 sm:$0xff]
  %s642 = scalar_lea.vmem %s626, 432 [#allocation2]
  %v643 = vld [vmem:[%s642] ss:$2 sm:$0xff]
  %s644 = scalar_lea.vmem %s626, 480 [#allocation2]
  %v645 = vld [vmem:[%s644] ss:$2 sm:$0xff]
  %s646 = scalar_lea.vmem %s626, 528 [#allocation2]
  %v647 = vld [vmem:[%s646] ss:$2 sm:$0xff]
  %s648 = scalar_lea.vmem %s626, 576 [#allocation2]
  %v649 = vld [vmem:[%s648] ss:$2 sm:$0xff]
  %s650 = scalar_lea.vmem %s626, 624 [#allocation2]
  %v651 = vld [vmem:[%s650] ss:$2 sm:$0xff]
  %s652 = scalar_lea.vmem %s626, 672 [#allocation2]
  %v653 = vld [vmem:[%s652] ss:$2 sm:$0xff]
  %s654 = scalar_lea.vmem %s626, 720 [#allocation2]
  %v655 = vld [vmem:[%s654] ss:$2 sm:$0xff]
  %s656 = scalar_lea.vmem %s626, 768 [#allocation2]
  %v657 = vld [vmem:[%s656] ss:$2 sm:$0xff]
  %v658 = vperm.slane %v233, 0
  %v659 = vmul.f32 %v658, %v627
  %v660 = vmul.f32 %v658, %v629
  %v661 = vmul.f32 %v658, %v631
  %v662 = vmul.f32 %v658, %v633
  %v663 = vmul.f32 %v658, %v635
  %v664 = vmul.f32 %v658, %v637
  %v665 = vmul.f32 %v658, %v639
  %v666 = vmul.f32 %v658, %v641
  %v667 = vmul.f32 %v658, %v643
  %v668 = vmul.f32 %v658, %v645
  %v669 = vmul.f32 %v658, %v647
  %v670 = vmul.f32 %v658, %v649
  %v671 = vmul.f32 %v658, %v651
  %v672 = vmul.f32 %v658, %v653
  %v673 = vmul.f32 %v658, %v655
  %v674 = vmul.f32 %v658, %v657
  %v675 = vadd.f32 %v610, %v659
  %v676 = vadd.f32 %v611, %v660
  %v677 = vadd.f32 %v612, %v661
  %v678 = vadd.f32 %v613, %v662
  %v679 = vadd.f32 %v614, %v663
  %v680 = vadd.f32 %v615, %v664
  %v681 = vadd.f32 %v616, %v665
  %v682 = vadd.f32 %v617, %v666
  %v683 = vadd.f32 %v618, %v667
  %v684 = vadd.f32 %v619, %v668
  %v685 = vadd.f32 %v620, %v669
  %v686 = vadd.f32 %v621, %v670
  %v687 = vadd.f32 %v622, %v671
  %v688 = vadd.f32 %v623, %v672
  %v689 = vadd.f32 %v624, %v673
  %v690 = vadd.f32 %v625, %v674
  %s691 = scalar_lea.vmem %s626, 1 [#allocation2]
  %v692 = vld [vmem:[%s691] ss:$2 sm:$0xff]
  %s693 = scalar_lea.vmem %s626, 49 [#allocation2]
  %v694 = vld [vmem:[%s693] ss:$2 sm:$0xff]
  %s695 = scalar_lea.vmem %s626, 97 [#allocation2]
  %v696 = vld [vmem:[%s695] ss:$2 sm:$0xff]
  %s697 = scalar_lea.vmem %s626, 145 [#allocation2]
  %v698 = vld [vmem:[%s697] ss:$2 sm:$0xff]
  %s699 = scalar_lea.vmem %s626, 193 [#allocation2]
  %v700 = vld [vmem:[%s699] ss:$2 sm:$0xff]
  %s701 = scalar_lea.vmem %s626, 241 [#allocation2]
  %v702 = vld [vmem:[%s701] ss:$2 sm:$0xff]
  %s703 = scalar_lea.vmem %s626, 289 [#allocation2]
  %v704 = vld [vmem:[%s703] ss:$2 sm:$0xff]
  %s705 = scalar_lea.vmem %s626, 337 [#allocation2]
  %v706 = vld [vmem:[%s705] ss:$2 sm:$0xff]
  %s707 = scalar_lea.vmem %s626, 433 [#allocation2]
  %v708 = vld [vmem:[%s707] ss:$2 sm:$0xff]
  %s709 = scalar_lea.vmem %s626, 481 [#allocation2]
  %v710 = vld [vmem:[%s709] ss:$2 sm:$0xff]
  %s711 = scalar_lea.vmem %s626, 529 [#allocation2]
  %v712 = vld [vmem:[%s711] ss:$2 sm:$0xff]
  %s713 = scalar_lea.vmem %s626, 577 [#allocation2]
  %v714 = vld [vmem:[%s713] ss:$2 sm:$0xff]
  %s715 = scalar_lea.vmem %s626, 625 [#allocation2]
  %v716 = vld [vmem:[%s715] ss:$2 sm:$0xff]
  %s717 = scalar_lea.vmem %s626, 673 [#allocation2]
  %v718 = vld [vmem:[%s717] ss:$2 sm:$0xff]
  %s719 = scalar_lea.vmem %s626, 721 [#allocation2]
  %v720 = vld [vmem:[%s719] ss:$2 sm:$0xff]
  %s721 = scalar_lea.vmem %s626, 769 [#allocation2]
  %v722 = vld [vmem:[%s721] ss:$2 sm:$0xff]
  %v723 = vperm.slane %v233, 1
  %v724 = vmul.f32 %v723, %v692
  %v725 = vmul.f32 %v723, %v694
  %v726 = vmul.f32 %v723, %v696
  %v727 = vmul.f32 %v723, %v698
  %v728 = vmul.f32 %v723, %v700
  %v729 = vmul.f32 %v723, %v702
  %v730 = vmul.f32 %v723, %v704
  %v731 = vmul.f32 %v723, %v706
  %v732 = vmul.f32 %v723, %v708
  %v733 = vmul.f32 %v723, %v710
  %v734 = vmul.f32 %v723, %v712
  %v735 = vmul.f32 %v723, %v714
  %v736 = vmul.f32 %v723, %v716
  %v737 = vmul.f32 %v723, %v718
  %v738 = vmul.f32 %v723, %v720
  %v739 = vmul.f32 %v723, %v722
  %v740 = vadd.f32 %v675, %v724
  %v741 = vadd.f32 %v676, %v725
  %v742 = vadd.f32 %v677, %v726
  %v743 = vadd.f32 %v678, %v727
  %v744 = vadd.f32 %v679, %v728
  %v745 = vadd.f32 %v680, %v729
  %v746 = vadd.f32 %v681, %v730
  %v747 = vadd.f32 %v682, %v731
  %v748 = vadd.f32 %v683, %v732
  %v749 = vadd.f32 %v684, %v733
  %v750 = vadd.f32 %v685, %v734
  %v751 = vadd.f32 %v686, %v735
  %v752 = vadd.f32 %v687, %v736
  %v753 = vadd.f32 %v688, %v737
  %v754 = vadd.f32 %v689, %v738
  %v755 = vadd.f32 %v690, %v739
  %s756 = scalar_lea.vmem %s626, 2 [#allocation2]
  %v757 = vld [vmem:[%s756] ss:$2 sm:$0xff]
  %s758 = scalar_lea.vmem %s626, 50 [#allocation2]
  %v759 = vld [vmem:[%s758] ss:$2 sm:$0xff]
  %s760 = scalar_lea.vmem %s626, 98 [#allocation2]
  %v761 = vld [vmem:[%s760] ss:$2 sm:$0xff]
  %s762 = scalar_lea.vmem %s626, 146 [#allocation2]
  %v763 = vld [vmem:[%s762] ss:$2 sm:$0xff]
  %s764 = scalar_lea.vmem %s626, 194 [#allocation2]
  %v765 = vld [vmem:[%s764] ss:$2 sm:$0xff]
  %s766 = scalar_lea.vmem %s626, 242 [#allocation2]
  %v767 = vld [vmem:[%s766] ss:$2 sm:$0xff]
  %s768 = scalar_lea.vmem %s626, 290 [#allocation2]
  %v769 = vld [vmem:[%s768] ss:$2 sm:$0xff]
  %s770 = scalar_lea.vmem %s626, 338 [#allocation2]
  %v771 = vld [vmem:[%s770] ss:$2 sm:$0xff]
  %s772 = scalar_lea.vmem %s626, 434 [#allocation2]
  %v773 = vld [vmem:[%s772] ss:$2 sm:$0xff]
  %s774 = scalar_lea.vmem %s626, 482 [#allocation2]
  %v775 = vld [vmem:[%s774] ss:$2 sm:$0xff]
  %s776 = scalar_lea.vmem %s626, 530 [#allocation2]
  %v777 = vld [vmem:[%s776] ss:$2 sm:$0xff]
  %s778 = scalar_lea.vmem %s626, 578 [#allocation2]
  %v779 = vld [vmem:[%s778] ss:$2 sm:$0xff]
  %s780 = scalar_lea.vmem %s626, 626 [#allocation2]
  %v781 = vld [vmem:[%s780] ss:$2 sm:$0xff]
  %s782 = scalar_lea.vmem %s626, 674 [#allocation2]
  %v783 = vld [vmem:[%s782] ss:$2 sm:$0xff]
  %s784 = scalar_lea.vmem %s626, 722 [#allocation2]
  %v785 = vld [vmem:[%s784] ss:$2 sm:$0xff]
  %s786 = scalar_lea.vmem %s626, 770 [#allocation2]
  %v787 = vld [vmem:[%s786] ss:$2 sm:$0xff]
  %v788 = vperm.slane %v233, 2
  %v789 = vmul.f32 %v788, %v757
  %v790 = vmul.f32 %v788, %v759
  %v791 = vmul.f32 %v788, %v761
  %v792 = vmul.f32 %v788, %v763
  %v793 = vmul.f32 %v788, %v765
  %v794 = vmul.f32 %v788, %v767
  %v795 = vmul.f32 %v788, %v769
  %v796 = vmul.f32 %v788, %v771
  %v797 = vmul.f32 %v788, %v773
  %v798 = vmul.f32 %v788, %v775
  %v799 = vmul.f32 %v788, %v777
  %v800 = vmul.f32 %v788, %v779
  %v801 = vmul.f32 %v788, %v781
  %v802 = vmul.f32 %v788, %v783
  %v803 = vmul.f32 %v788, %v785
  %v804 = vmul.f32 %v788, %v787
  %v805 = vadd.f32 %v740, %v789
  %v806 = vadd.f32 %v741, %v790
  %v807 = vadd.f32 %v742, %v791
  %v808 = vadd.f32 %v743, %v792
  %v809 = vadd.f32 %v744, %v793
  %v810 = vadd.f32 %v745, %v794
  %v811 = vadd.f32 %v746, %v795
  %v812 = vadd.f32 %v747, %v796
  %v813 = vadd.f32 %v748, %v797
  %v814 = vadd.f32 %v749, %v798
  %v815 = vadd.f32 %v750, %v799
  %v816 = vadd.f32 %v751, %v800
  %v817 = vadd.f32 %v752, %v801
  %v818 = vadd.f32 %v753, %v802
  %v819 = vadd.f32 %v754, %v803
  %v820 = vadd.f32 %v755, %v804
  %821 = vst.msk [vmem:[%s3] sm:$0xff] %vm14, %v805
  %822 = vst.msk [vmem:[%s3 + $0x8] sm:$0xff] %vm14, %v806
  %823 = vst.msk [vmem:[%s3 + $0x10] sm:$0xff] %vm14, %v807
  %824 = vst.msk [vmem:[%s3 + $0x18] sm:$0xff] %vm14, %v808
  %825 = vst.msk [vmem:[%s3 + $0x20] sm:$0xff] %vm14, %v809
  %826 = vst.msk [vmem:[%s3 + $0x28] sm:$0xff] %vm14, %v810
  %827 = vst.msk [vmem:[%s3 + $0x30] sm:$0xff] %vm14, %v811
  %828 = vst.msk [vmem:[%s3 + $0x38] sm:$0xff] %vm14, %v812
  %829 = vst.msk [vmem:[%s3 + $0x40] sm:$0xff] %vm14, %v813
  %830 = vst.msk [vmem:[%s3 + $0x48] sm:$0xff] %vm14, %v814
  %831 = vst.msk [vmem:[%s3 + $0x50] sm:$0xff] %vm14, %v815
  %832 = vst.msk [vmem:[%s3 + $0x58] sm:$0xff] %vm14, %v816
  %833 = vst.msk [vmem:[%s3 + $0x60] sm:$0xff] %vm14, %v817
  %834 = vst.msk [vmem:[%s3 + $0x68] sm:$0xff] %vm14, %v818
  %835 = vst.msk [vmem:[%s3 + $0x70] sm:$0xff] %vm14, %v819
  %836 = vst.msk [vmem:[%s3 + $0x78] sm:$0xff] %vm14, %v820
  // Predicated region
  $region14: #{tpu_custom_call.1} parent=0 // pred_check
    _
  $region15: #{tpu_custom_call.1} parent=0 // pred_check_branch
    %838 = sbr.rel (0) target = $region17
  $region16: #{tpu_custom_call.1} parent=0 // pred_region
    _
  $region17: #{tpu_custom_call.1} parent=0 // pred_fallthru
    _
  // Predicated region
  $region18: #{tpu_custom_call.1} parent=0 // pred_check
    _
  $region19: #{tpu_custom_call.1} parent=0 // pred_check_branch
    %840 = sbr.rel (0) target = $region21
  $region20: #{tpu_custom_call.1} parent=0 // pred_region
    _
  $region21: #{tpu_custom_call.1} parent=0 // pred_fallthru
    _

</llo_original>
